<compile_context>
chip_gen: v7x
topology: tpu7x:2x2x1
jax: 0.10.0
libtpu: 0.0.40
codegen_flags: <defaults>
</compile_context>

<pallas_src>
from functools import partial

import jax
import jax.numpy as jnp
from jax.experimental import pallas as pl
from jax.experimental.pallas import tpu as pltpu


def _round_up(n, m):
    return ((n + m - 1) // m) * m


def _mlp_kernel(x_ref, w1_ref, b1_ref, w2_ref, b2_ref, o_ref):
    # hidden = relu(x @ W1 + b1)  -- MXU matmul, f32 accumulate, f32 epilogue
    h = jnp.dot(x_ref[...], w1_ref[...], preferred_element_type=jnp.float32)
    h = jnp.maximum(h + b1_ref[...], 0.0)          # (TB, H) + (1, H), VPU in f32
    # out = h @ W2 + b2  (no activation, matches PyTorch forward)
    h = h.astype(w2_ref.dtype)                     # feed MXU in weight dtype (bf16 opt.)
    y = jnp.dot(h, w2_ref[...], preferred_element_type=jnp.float32)
    o_ref[...] = (y + b2_ref[...]).astype(o_ref.dtype)


def prepare_params(w1, b1, w2, b2, *, param_dtype=jnp.float32):
    """One-time glue (hoisted out of the per-call path).

    w1: (H, F) torch layout; b1: (H,); w2: (O, H); b2: (O,).
    Returns weights pre-transposed to (in, out), biases as (1, out) f32, and
    the second layer padded along its output dim to a lane-dense multiple of
    128 so the kernel's stores are unmasked.
    """
    H, F = w1.shape
    O = w2.shape[0]
    O_pad = _round_up(O, 128)

    w1_t = jnp.asarray(w1).T.astype(param_dtype)                    # (F, H)
    b1_2d = jnp.asarray(b1).reshape(1, H).astype(jnp.float32)       # (1, H)
    w2_t = jnp.zeros((H, O_pad), param_dtype).at[:, :O].set(
        jnp.asarray(w2).T.astype(param_dtype))                      # (H, O_pad)
    b2_2d = jnp.zeros((1, O_pad), jnp.float32).at[:, :O].set(
        jnp.asarray(b2).astype(jnp.float32))                        # (1, O_pad)
    return (w1_t, b1_2d, w2_t, b2_2d, O)


@partial(jax.jit, static_argnames=("n_out", "block_b"))
def _mlp_forward_impl(x, w1_t, b1_2d, w2_t, b2_2d, *, n_out, block_b):
    B, F = x.shape
    H = w1_t.shape[1]
    O_pad = w2_t.shape[1]
    out_dtype = x.dtype

    # MXU input dtype follows the (possibly bf16) weights; halves x DMA at scale.
    x = x.astype(w1_t.dtype)

    # Vreg-aware batch tile: sublane-aligned, capped (TB=256 keeps the f32
    # hidden activation well under 64 vregs and the double-buffered tiles tiny
    # vs. v7x's 32 MiB scoped VMEM).
    TB = min(block_b, _round_up(B, 8))
    B_pad = _round_up(B, TB)
    if B_pad != B:
        x = jnp.pad(x, ((0, B_pad - B), (0, 0)))

    grid = (B_pad // TB,)
    out = pl.pallas_call(
        _mlp_kernel,
        out_shape=jax.ShapeDtypeStruct((B_pad, O_pad), jnp.float32),
        grid_spec=pltpu.PrefetchScalarGridSpec(
            num_scalar_prefetch=0,
            grid=grid,
            in_specs=[
                pl.BlockSpec((TB, F), lambda i: (i, 0)),     # x tile, pipelined
                pl.BlockSpec((F, H), lambda i: (0, 0)),      # W1 resident
                pl.BlockSpec((1, H), lambda i: (0, 0)),      # b1 resident
                pl.BlockSpec((H, O_pad), lambda i: (0, 0)),  # W2 resident
                pl.BlockSpec((1, O_pad), lambda i: (0, 0)),  # b2 resident
            ],
            out_specs=pl.BlockSpec((TB, O_pad), lambda i: (i, 0)),
        ),
        compiler_params=pltpu.CompilerParams(
            dimension_semantics=("parallel",),  # megacore sharding on v7x
        ),
    )(x, w1_t, b1_2d, w2_t, b2_2d)

    # Un-pad batch and lane-padded output dim; restore caller dtype.
    return out[:B, :n_out].astype(out_dtype)


def mlp_forward(x, params, *, block_b=256):
    """x: (B, F); params: output of prepare_params()."""
    w1_t, b1_2d, w2_t, b2_2d, n_out = params
    return _mlp_forward_impl(x, w1_t, b1_2d, w2_t, b2_2d,
                             n_out=n_out, block_b=block_b)


def mlp_reference(x, w1, b1, w2, b2):
    h = jnp.maximum(x @ w1.T + b1, 0.0)
    return h @ w2.T + b2


if __name__ == "__main__":
    # Iris-like sizes: 4 features -> 32 hidden -> 3 classes.
    F, H, O = 4, 32, 3
    B_small, B_big = 8, 512  # B_big exercises the batch grid / pipelining

    key = jax.random.PRNGKey(0)
    kx, kx2, kw1, kb1, kw2, kb2 = jax.random.split(key, 6)

    x_small = jax.random.normal(kx, (B_small, F), dtype=jnp.float32)
    x_big = jax.random.normal(kx2, (B_big, F), dtype=jnp.float32)
    # Deterministic param init (mimics torch.nn.Linear uniform bounds).
    w1 = jax.random.uniform(kw1, (H, F), jnp.float32, -1.0 / F**0.5, 1.0 / F**0.5)
    b1 = jax.random.uniform(kb1, (H,), jnp.float32, -1.0 / F**0.5, 1.0 / F**0.5)
    w2 = jax.random.uniform(kw2, (O, H), jnp.float32, -1.0 / H**0.5, 1.0 / H**0.5)
    b2 = jax.random.uniform(kb2, (O,), jnp.float32, -1.0 / H**0.5, 1.0 / H**0.5)

    # --- f32 params: exact check against reference -------------------------
    params_f32 = prepare_params(w1, b1, w2, b2, param_dtype=jnp.float32)

    out_small = jax.block_until_ready(mlp_forward(x_small, params_f32))
    ref_small = mlp_reference(x_small, w1, b1, w2, b2)
    assert out_small.shape == (B_small, O)
    assert jnp.allclose(out_small, ref_small, atol=1e-5, rtol=1e-5), \
        "f32 small-batch mismatch vs reference"

    out_big = jax.block_until_ready(mlp_forward(x_big, params_f32, block_b=256))
    ref_big = mlp_reference(x_big, w1, b1, w2, b2)
    assert out_big.shape == (B_big, O)
    assert jnp.allclose(out_big, ref_big, atol=1e-5, rtol=1e-5), \
        "f32 tiled-batch mismatch vs reference"

    # --- bf16 MXU inputs (f32 accumulate + f32 epilogue): looser tolerance --
    params_bf16 = prepare_params(w1, b1, w2, b2, param_dtype=jnp.bfloat16)
    out_bf16 = jax.block_until_ready(mlp_forward(x_big, params_bf16, block_b=256))
    assert out_bf16.shape == (B_big, O)
    assert jnp.allclose(out_bf16, ref_big, atol=3e-2, rtol=3e-2), \
        "bf16 mismatch vs reference"

    print("KERNEL_OK")
</pallas_src>

<mosaic_0001>
module attributes {stable_mosaic.version = 11 : i64} {
  func.func @_mlp_kernel(%arg0: i32, %arg1: memref<8x4xf32, #tpu.memory_space<vmem>>, %arg2: memref<4x32xf32, #tpu.memory_space<vmem>>, %arg3: memref<1x32xf32, #tpu.memory_space<vmem>>, %arg4: memref<32x128xf32, #tpu.memory_space<vmem>>, %arg5: memref<1x128xf32, #tpu.memory_space<vmem>>, %arg6: memref<8x128xf32, #tpu.memory_space<vmem>>) attributes {dimension_semantics = [#tpu.dimension_semantics<parallel>], iteration_bounds = array<i64: 1>, scalar_prefetch = 0 : i64, scratch_operands = 0 : i64, tpu.core_type = #tpu.core_type<tc>, window_params = [{transform_indices = @transform_0, window_bounds = array<i64: 8, 4>}, {pipeline_mode = #tpu.pipeline_mode<synchronous>, transform_indices = @transform_1, window_bounds = array<i64: 4, 32>}, {pipeline_mode = #tpu.pipeline_mode<synchronous>, transform_indices = @transform_2, window_bounds = array<i64: 1, 32>}, {pipeline_mode = #tpu.pipeline_mode<synchronous>, transform_indices = @transform_3, window_bounds = array<i64: 32, 128>}, {pipeline_mode = #tpu.pipeline_mode<synchronous>, transform_indices = @transform_4, window_bounds = array<i64: 1, 128>}, {transform_indices = @transform_5, window_bounds = array<i64: 8, 128>}]} {
    %c0 = arith.constant 0 : index
    %c0_0 = arith.constant 0 : index
    %0 = vector.load %arg1[%c0, %c0_0] : memref<8x4xf32, #tpu.memory_space<vmem>>, vector<8x4xf32>
    %c0_1 = arith.constant 0 : index
    %c0_2 = arith.constant 0 : index
    %1 = vector.load %arg2[%c0_1, %c0_2] : memref<4x32xf32, #tpu.memory_space<vmem>>, vector<4x32xf32>
    %cst = arith.constant dense<0.000000e+00> : vector<8x32xf32>
    %2 = tpu.matmul %0, %1, %cst {dimension_numbers = #tpu.dot_dimension_numbers<[1], [0], [0], [1], [0, 0, 1, 1], [], []>} : vector<8x4xf32>, vector<4x32xf32>, vector<8x32xf32> -> vector<8x32xf32>
    %c0_3 = arith.constant 0 : index
    %c0_4 = arith.constant 0 : index
    %3 = vector.load %arg3[%c0_3, %c0_4] : memref<1x32xf32, #tpu.memory_space<vmem>>, vector<1x32xf32>
    %4 = vector.broadcast %3 : vector<1x32xf32> to vector<8x32xf32>
    %5 = arith.addf %2, %4 : vector<8x32xf32>
    %cst_5 = arith.constant 0.000000e+00 : f32
    %6 = vector.broadcast %cst_5 : f32 to vector<8x32xf32>
    %7 = arith.maximumf %5, %6 : vector<8x32xf32>
    %c0_6 = arith.constant 0 : index
    %c0_7 = arith.constant 0 : index
    %8 = vector.load %arg4[%c0_6, %c0_7] : memref<32x128xf32, #tpu.memory_space<vmem>>, vector<32x128xf32>
    %cst_8 = arith.constant dense<0.000000e+00> : vector<8x128xf32>
    %9 = tpu.matmul %7, %8, %cst_8 {dimension_numbers = #tpu.dot_dimension_numbers<[1], [0], [0], [1], [0, 0, 1, 1], [], []>} : vector<8x32xf32>, vector<32x128xf32>, vector<8x128xf32> -> vector<8x128xf32>
    %c0_9 = arith.constant 0 : index
    %c0_10 = arith.constant 0 : index
    %10 = vector.load %arg5[%c0_9, %c0_10] : memref<1x128xf32, #tpu.memory_space<vmem>>, vector<1x128xf32>
    %11 = vector.broadcast %10 : vector<1x128xf32> to vector<8x128xf32>
    %12 = arith.addf %9, %11 : vector<8x128xf32>
    %c0_11 = arith.constant 0 : index
    %c0_12 = arith.constant 0 : index
    %13 = vector.load %arg6[%c0_11, %c0_12] : memref<8x128xf32, #tpu.memory_space<vmem>>, vector<8x128xf32>
    tpu.vector_store %arg6[%c0_11, %c0_12], %12 {strides = array<i32>} : memref<8x128xf32, #tpu.memory_space<vmem>>, vector<8x128xf32>,
    return
  }
  func.func @transform_0(%arg0: i32) -> (i32, i32) {
    %c0_i32 = arith.constant 0 : i32
    %c0_i32_0 = arith.constant 0 : i32
    return %arg0, %c0_i32 : i32, i32
  }
  func.func @transform_1(%arg0: i32) -> (i32, i32) {
    %c0_i32 = arith.constant 0 : i32
    %c0_i32_0 = arith.constant 0 : i32
    %c0_i32_1 = arith.constant 0 : i32
    return %c0_i32, %c0_i32_0 : i32, i32
  }
  func.func @transform_2(%arg0: i32) -> (i32, i32) {
    %c0_i32 = arith.constant 0 : i32
    %c0_i32_0 = arith.constant 0 : i32
    %c0_i32_1 = arith.constant 0 : i32
    return %c0_i32, %c0_i32_0 : i32, i32
  }
  func.func @transform_3(%arg0: i32) -> (i32, i32) {
    %c0_i32 = arith.constant 0 : i32
    %c0_i32_0 = arith.constant 0 : i32
    %c0_i32_1 = arith.constant 0 : i32
    return %c0_i32, %c0_i32_0 : i32, i32
  }
  func.func @transform_4(%arg0: i32) -> (i32, i32) {
    %c0_i32 = arith.constant 0 : i32
    %c0_i32_0 = arith.constant 0 : i32
    %c0_i32_1 = arith.constant 0 : i32
    return %c0_i32, %c0_i32_0 : i32, i32
  }
  func.func @transform_5(%arg0: i32) -> (i32, i32) {
    %c0_i32 = arith.constant 0 : i32
    %c0_i32_0 = arith.constant 0 : i32
    return %arg0, %c0_i32 : i32, i32
  }
}

</mosaic_0001>

<llo_original>
// kernel: _mlp_forward_impl.1
$region0: #{_mlp_forward_impl.1}
  #allocation0 [shape = 'u32[]', space=smem, size = 0x4, offset = 0x4, fixed_abs, tag = 'smem constant byte address 0x4 - core index']
  #allocation1 [shape = 'u32[144,128]{1,0:T(1,128)}', space=vmem, size = 0x12000, scoped, tag = 'internal scratch']
  %s0 = inlined_call_operand.vmem [shape: f32[8,4], index: 0, kind: input, shape index: {}]
  %s1 = inlined_call_operand.vmem [shape: f32[4,32], index: 1, kind: input, shape index: {}]
  %s2 = inlined_call_operand.vmem [shape: f32[1,32], index: 2, kind: input, shape index: {}]
  %s3 = inlined_call_operand.hbm [shape: f32[32,128], index: 3, kind: input, shape index: {}]
  %s4 = inlined_call_operand.vmem [shape: f32[1,128], index: 4, kind: input, shape index: {}]
  %s5 = inlined_call_operand.vmem [shape: f32[8,128], index: 5, kind: output, shape index: {}]
  %s6 = sld [smem:[#allocation0]]
  $region34: #{_mlp_forward_impl.1} parent=0
    _
  %s8 = ssub.s32 1, %s6
  %s9 = scalar_select 0, %s8, %s6
  $region1: #{_mlp_forward_impl.1} parent=0
    #allocation2 [shape = 'u8[16384]{0}', space=vmem, size = 0x4000, scoped, tag = 'input window, operand 3, single buffered']
    #allocation3 [shape = 's32[1]{0}', space=sflag, size = 0x4, scoped, tag = 'scoped memory for _mlp_forward_impl.1']
    %10 = vsyncpa [#allocation3], 0
    // Predicated region
    $region2: #{_mlp_forward_impl.1} parent=1 // pred_check
      _
    $region3: #{_mlp_forward_impl.1} parent=1 // pred_check_branch
      %12 = sbr.rel (0) target = $region5
    $region4: #{_mlp_forward_impl.1} parent=1 // pred_region
      _
    $region5: #{_mlp_forward_impl.1} parent=1 // pred_fallthru
      _
    // Predicated region
    $region6: #{_mlp_forward_impl.1} parent=1 // pred_check
      _
    $region7: #{_mlp_forward_impl.1} parent=1 // pred_check_branch
      %14 = sbr.rel (0) target = $region9
    $region8: #{_mlp_forward_impl.1} parent=1 // pred_region
      _
    $region9: #{_mlp_forward_impl.1} parent=1 // pred_fallthru
      _
    // Predicated region
    $region10: #{_mlp_forward_impl.1} parent=1 // pred_check
      _
    $region11: #{_mlp_forward_impl.1} parent=1 // pred_check_branch
      %16 = sbr.rel (0) target = $region13
    $region12: #{_mlp_forward_impl.1} parent=1 // pred_region
      _
    $region13: #{_mlp_forward_impl.1} parent=1 // pred_fallthru
      _
    // Predicated region
    $region14: #{_mlp_forward_impl.1} parent=1 // pred_check
      _
    $region15: #{_mlp_forward_impl.1} parent=1 // pred_check_branch
      %18 = sbr.rel (0) target = $region17
    $region16: #{_mlp_forward_impl.1} parent=1 // pred_region
      %s20 = ssub.s32 512, 512
      %21 = vsyncadd [#allocation3], %s20
      %s22 = sshll.u32 [#allocation2], 4
      %s23 = int_to_ptr.vmem [resolvable:$true] %s22
      %28 = dma.hbm_to_vmem [thread:$0]  %s3, 512, %s23, [#allocation3], 128, 128, 8
    $region17: #{_mlp_forward_impl.1} parent=1 // pred_fallthru
      _
    // Predicated region
    $region18: #{_mlp_forward_impl.1} parent=1 // pred_check
      _
    $region19: #{_mlp_forward_impl.1} parent=1 // pred_check_branch
      %30 = sbr.rel (0) target = $region21
    $region20: #{_mlp_forward_impl.1} parent=1 // pred_region
      _
    $region21: #{_mlp_forward_impl.1} parent=1 // pred_fallthru
      _
    // Predicated region
    $region22: #{_mlp_forward_impl.1} parent=1 // pred_check
      _
    $region23: #{_mlp_forward_impl.1} parent=1 // pred_check_branch
      %32 = sbr.rel (0) target = $region25
    $region24: #{_mlp_forward_impl.1} parent=1 // pred_region
      %33 = dma.done [#allocation3], 512
    $region25: #{_mlp_forward_impl.1} parent=1 // pred_fallthru
      _
    %v34 = vld [vmem:[%s0] sm:$0xff]
    %v35 = vld [vmem:[%s1] sm:$0xf]
    %v36 = vld [vmem:[%s2] sm:$0x1]
    %v38 = vlaneseq
    %v39 = vshrl.u32 %v38, 7
    %v40 = vsub.s32 0, %v39
    %v41 = vrot.slane %v36, %v40
    %vm43 = vcmask 31744
    %v45 = vsel %vm43, %v34, 0
    %vm47 = vcmask 1043456
    %v49 = vsel %vm47, %v35, 0
    %51 = vmatprep.subr.mxu0 0.0
    %52 = vmatpush1.msra.mxu0 %v49
    %53 = vmatprep.subr.mxu0 0.0
    %54 = vmatpush1.msra.mxu0 0.0
    %55 = vmatprep.subr.mxu0 0.0
    %56 = vmatpush1.msra.mxu0 0.0
    %57 = vmatprep.subr.mxu0 0.0
    %58 = vmatpush1.msra.mxu0 0.0
    %59 = vmatprep.subr.mxu0 0.0
    %60 = vmatpush1.msra.mxu0 0.0
    %61 = vmatprep.subr.mxu0 0.0
    %62 = vmatpush1.msra.mxu0 0.0
    %63 = vmatprep.subr.mxu0 0.0
    %64 = vmatpush1.msra.mxu0 0.0
    %65 = vmatprep.subr.mxu0 0.0
    %66 = vmatpush1.msra.mxu0 0.0
    %67 = vmatprep.subr.mxu0 0.0
    %68 = vmatpush1.msra.mxu0 0.0
    %69 = vmatprep.subr.mxu0 0.0
    %70 = vmatpush1.msra.mxu0 0.0
    %71 = vmatprep.subr.mxu0 0.0
    %72 = vmatpush1.msra.mxu0 0.0
    %73 = vmatprep.subr.mxu0 0.0
    %74 = vmatpush1.msra.mxu0 0.0
    %75 = vmatprep.subr.mxu0 0.0
    %76 = vmatpush1.msra.mxu0 0.0
    %77 = vmatprep.subr.mxu0 0.0
    %78 = vmatpush1.msra.mxu0 0.0
    %79 = vmatprep.subr.mxu0 0.0
    %80 = vmatpush1.msra.mxu0 0.0
    %81 = vmatprep.subr.mxu0 0.0
    %82 = vmatpush1.msra.mxu0 0.0
    %83 = vmatprep.subr.mxu0 0.0
    %84 = vmatpush1.msra.mxu0 0.0
    %85 = vmatprep.subr.mxu0 0.0
    %86 = vmatpush1.msra.mxu0 0.0
    %87 = vmatprep.subr.mxu0 0.0
    %88 = vmatpush1.msra.mxu0 0.0
    %89 = vmatprep.subr.mxu0 0.0
    %90 = vmatpush1.msra.mxu0 0.0
    %91 = vmatprep.subr.mxu0 0.0
    %92 = vmatpush1.msra.mxu0 0.0
    %93 = vmatprep.subr.mxu0 0.0
    %94 = vmatpush1.msra.mxu0 0.0
    %95 = vmatprep.subr.mxu0 0.0
    %96 = vmatpush1.msra.mxu0 0.0
    %97 = vmatprep.subr.mxu0 0.0
    %98 = vmatpush1.msra.mxu0 0.0
    %99 = vmatprep.subr.mxu0 0.0
    %100 = vmatpush1.msra.mxu0 0.0
    %101 = vmatprep.subr.mxu0 0.0
    %102 = vmatpush1.msra.mxu0 0.0
    %103 = vmatprep.subr.mxu0 0.0
    %104 = vmatpush1.msra.mxu0 0.0
    %105 = vmatprep.subr.mxu0 0.0
    %106 = vmatpush1.msra.mxu0 0.0
    %107 = vmatprep.subr.mxu0 0.0
    %108 = vmatpush1.msra.mxu0 0.0
    %109 = vmatprep.subr.mxu0 0.0
    %110 = vmatpush1.msra.mxu0 0.0
    %111 = vmatprep.subr.mxu0 0.0
    %112 = vmatpush1.msra.mxu0 0.0
    %113 = vmatprep.subr.mxu0 0.0
    %114 = vmatpush1.msra.mxu0 0.0
    %115 = vmatprep.mubr.f32.mxu0 0.0
    %116 = vmatmul.mubr.f32.gmra.mrb[0].mxu0 %v45
    %v117 = vpop.f32.mrb[0].mxu0
    %v118 = vadd.f32 %v41, %v117
    %v119 = vpop.f32.mrb[0].mxu0
    %120 = vdwg.mxu0
    %v121 = vmax.f32 %v118, 0.0
    %v122 = vld [vmem:[#allocation2] sm:$0xff]
    %v123 = vld [vmem:[#allocation2 + $0x8] sm:$0xff]
    %v124 = vld [vmem:[#allocation2 + $0x10] sm:$0xff]
    %v125 = vld [vmem:[#allocation2 + $0x18] sm:$0xff]
    %v126 = vld [vmem:[%s4] sm:$0x1]
    %v128 = vlaneseq
    %v129 = vshrl.u32 %v128, 7
    %v130 = vsub.s32 0, %v129
    %v131 = vrot.slane %v126, %v130
    %vm133 = vcmask 261120
    %v135 = vsel %vm133, %v121, 0
    %137 = vmatprep.subr.mxu0 0.0
    %138 = vmatpush1.msra.mxu0 %v122
    %139 = vmatprep.subr.mxu0 0.0
    %140 = vmatpush1.msra.mxu0 %v123
    %141 = vmatprep.subr.mxu0 0.0
    %142 = vmatpush1.msra.mxu0 %v124
    %143 = vmatprep.subr.mxu0 0.0
    %144 = vmatpush1.msra.mxu0 %v125
    %145 = vmatprep.subr.mxu0 0.0
    %146 = vmatpush1.msra.mxu0 0.0
    %147 = vmatprep.subr.mxu0 0.0
    %148 = vmatpush1.msra.mxu0 0.0
    %149 = vmatprep.subr.mxu0 0.0
    %150 = vmatpush1.msra.mxu0 0.0
    %151 = vmatprep.subr.mxu0 0.0
    %152 = vmatpush1.msra.mxu0 0.0
    %153 = vmatprep.subr.mxu0 0.0
    %154 = vmatpush1.msra.mxu0 0.0
    %155 = vmatprep.subr.mxu0 0.0
    %156 = vmatpush1.msra.mxu0 0.0
    %157 = vmatprep.subr.mxu0 0.0
    %158 = vmatpush1.msra.mxu0 0.0
    %159 = vmatprep.subr.mxu0 0.0
    %160 = vmatpush1.msra.mxu0 0.0
    %161 = vmatprep.subr.mxu0 0.0
    %162 = vmatpush1.msra.mxu0 0.0
    %163 = vmatprep.subr.mxu0 0.0
    %164 = vmatpush1.msra.mxu0 0.0
    %165 = vmatprep.subr.mxu0 0.0
    %166 = vmatpush1.msra.mxu0 0.0
    %167 = vmatprep.subr.mxu0 0.0
    %168 = vmatpush1.msra.mxu0 0.0
    %169 = vmatprep.subr.mxu0 0.0
    %170 = vmatpush1.msra.mxu0 0.0
    %171 = vmatprep.subr.mxu0 0.0
    %172 = vmatpush1.msra.mxu0 0.0
    %173 = vmatprep.subr.mxu0 0.0
    %174 = vmatpush1.msra.mxu0 0.0
    %175 = vmatprep.subr.mxu0 0.0
    %176 = vmatpush1.msra.mxu0 0.0
    %177 = vmatprep.subr.mxu0 0.0
    %178 = vmatpush1.msra.mxu0 0.0
    %179 = vmatprep.subr.mxu0 0.0
    %180 = vmatpush1.msra.mxu0 0.0
    %181 = vmatprep.subr.mxu0 0.0
    %182 = vmatpush1.msra.mxu0 0.0
    %183 = vmatprep.subr.mxu0 0.0
    %184 = vmatpush1.msra.mxu0 0.0
    %185 = vmatprep.subr.mxu0 0.0
    %186 = vmatpush1.msra.mxu0 0.0
    %187 = vmatprep.subr.mxu0 0.0
    %188 = vmatpush1.msra.mxu0 0.0
    %189 = vmatprep.subr.mxu0 0.0
    %190 = vmatpush1.msra.mxu0 0.0
    %191 = vmatprep.subr.mxu0 0.0
    %192 = vmatpush1.msra.mxu0 0.0
    %193 = vmatprep.subr.mxu0 0.0
    %194 = vmatpush1.msra.mxu0 0.0
    %195 = vmatprep.subr.mxu0 0.0
    %196 = vmatpush1.msra.mxu0 0.0
    %197 = vmatprep.subr.mxu0 0.0
    %198 = vmatpush1.msra.mxu0 0.0
    %199 = vmatprep.subr.mxu0 0.0
    %200 = vmatpush1.msra.mxu0 0.0
    %201 = vmatprep.mubr.f32.mxu0 0.0
    %202 = vmatmul.mubr.f32.gmra.mrb[0].mxu0 %v135
    %v203 = vpop.f32.mrb[0].mxu0
    %v204 = vadd.f32 %v131, %v203
    %v205 = vpop.f32.mrb[0].mxu0
    %206 = vdwg.mxu0
    %207 = vst [vmem:[%s5] sm:$0xff] %v204
    // Predicated region
    $region26: #{_mlp_forward_impl.1} parent=1 // pred_check
      _
    $region27: #{_mlp_forward_impl.1} parent=1 // pred_check_branch
      %209 = sbr.rel (0) target = $region29
    $region28: #{_mlp_forward_impl.1} parent=1 // pred_region
      _
    $region29: #{_mlp_forward_impl.1} parent=1 // pred_fallthru
      _
    // Predicated region
    $region30: #{_mlp_forward_impl.1} parent=1 // pred_check
      _
    $region31: #{_mlp_forward_impl.1} parent=1 // pred_check_branch
      %211 = sbr.rel (0) target = $region33
    $region32: #{_mlp_forward_impl.1} parent=1 // pred_region
      _
    $region33: #{_mlp_forward_impl.1} parent=1 // pred_fallthru
      _
    %212 = vsyncpa [#allocation3], 1

</llo_original>
